<compile_context>
chip_gen: v6e
topology: v6e:2x2x1
jax: 0.10.0
libtpu: 0.0.40
codegen_flags: <defaults>
</compile_context>

<pallas_src>
import functools
import math

import jax
import jax.numpy as jnp
from jax.experimental import pallas as pl
from jax.experimental.pallas import tpu as pltpu

_NEG = -1.0e30  # finite "minus infinity" for masking (avoids inf-inf NaNs)


def _round_up(x, n):
    return (x + n - 1) // n * n


def _angular_penalty_kernel(wf_ref, labels_ref, out_ref, t_acc, m_acc, l_acc, *,
                            loss_type, s, m, eps, num_classes, tile_c, has_col_pad):
    c_idx = pl.program_id(1)

    @pl.when(c_idx == 0)
    def _init():
        t_acc[...] = jnp.zeros_like(t_acc)
        m_acc[...] = jnp.full_like(m_acc, _NEG)
        l_acc[...] = jnp.zeros_like(l_acc)

    wf = wf_ref[...].astype(jnp.float32)          # (tb, tc)
    labels = labels_ref[...]                      # (tb, 1) int32
    tb, tc = wf.shape

    col = jax.lax.broadcasted_iota(jnp.int32, (tb, tc), 1) + c_idx * tile_c
    is_target = col == labels                     # one-hot of the label column
    not_target = jnp.logical_not(is_target)
    if has_col_pad:                               # static: only when C was padded
        is_valid = jnp.logical_and(col < num_classes, not_target)
    else:
        is_valid = not_target

    # Accumulate wf[i, labels[i]] (each row's label falls in exactly one C tile).
    t_acc[...] += jnp.sum(jnp.where(is_target, wf, 0.0), axis=1, keepdims=True)

    # Streaming log-sum-exp over the non-target (non-padding) columns of s*wf.
    z = s * wf
    z_masked = jnp.where(is_valid, z, _NEG)
    m_new = jnp.maximum(m_acc[...], jnp.max(z_masked, axis=1, keepdims=True))
    p = jnp.where(is_valid, jnp.exp(z - m_new), 0.0)
    l_acc[...] = jnp.exp(m_acc[...] - m_new) * l_acc[...] + jnp.sum(p, axis=1,
                                                                    keepdims=True)
    m_acc[...] = m_new

    @pl.when(c_idx == pl.num_programs(1) - 1)
    def _finalize():
        target = t_acc[...]                       # (tb, 1)
        if loss_type == 'cosface':
            numerator = s * (target - m)
        elif loss_type == 'arcface':
            clamped = jnp.clip(target, -1.0 + eps, 1.0 - eps)
            # cos(acos(x) + m) == x*cos(m) - sqrt(1 - x^2)*sin(m)  (exact identity)
            numerator = s * (clamped * math.cos(m)
                             - jnp.sqrt(1.0 - clamped * clamped) * math.sin(m))
        elif loss_type == 'sphereface':
            clamped = jnp.clip(target, -1.0 + eps, 1.0 - eps)
            numerator = s * jnp.cos(m * jnp.arccos(clamped))
        else:
            raise ValueError(loss_type)

        # loss = numerator - log(exp(numerator) + sum_{j != y} exp(s*wf_j))
        # where sum_{j != y} exp(s*wf_j) == exp(m_acc) * l_acc; computed stably.
        big = jnp.maximum(numerator, m_acc[...])
        log_den = big + jnp.log(jnp.exp(numerator - big)
                                + l_acc[...] * jnp.exp(m_acc[...] - big))
        neg_loss = log_den - numerator            # (tb, 1)  ==  -loss

        # Lane-dense store: relayout (tb, 1) -> (1, tb) with a masked sublane-sum
        # (keeps the output store a full, unmasked lane-major row).
        rows = jax.lax.broadcasted_iota(jnp.int32, (tb, tb), 0)
        cols = jax.lax.broadcasted_iota(jnp.int32, (tb, tb), 1)
        out_ref[...] = jnp.sum(jnp.where(rows == cols, neg_loss, 0.0),
                               axis=0, keepdims=True)


def angular_penalty_sm_loss(wf, labels, *, loss_type='arcface', eps=1e-7,
                            s=None, m=None, reduction=True):
    """Pallas implementation of AngularPenaltySMLoss.forward (angular-margin paths)."""
    loss_type = loss_type.lower()
    assert loss_type in ('arcface', 'sphereface', 'cosface')
    # TODO(synk): 'crossentropy' and 'gce' branches of the PyTorch module (plain
    #             log_softmax / nll, no angular margin) and the `weights` arg are not
    #             implemented here.
    if loss_type == 'arcface':
        s = 64.0 if s is None else s
        m = 0.5 if m is None else m
    elif loss_type == 'sphereface':
        s = 64.0 if s is None else s
        m = 1.35 if m is None else m
    else:  # cosface
        s = 30.0 if s is None else s
        m = 0.4 if m is None else m

    B, C = wf.shape

    # Tile selection.  2 pipeline buffers of a 256x4096 f32 tile = 8 MiB, comfortably
    # inside the 32 MiB scoped-VMEM limit set below (and v7x's 64 MiB physical VMEM).
    tile_b = _round_up(B, 8) if B <= 512 else 256
    b_pad = _round_up(B, tile_b)
    tile_c = _round_up(C, 128) if C <= 4096 else 4096
    c_pad = _round_up(C, tile_c)
    nb, nc = b_pad // tile_b, c_pad // tile_c
    has_col_pad = c_pad != C

    wf_p = wf
    if (b_pad, c_pad) != (B, C):
        wf_p = jnp.pad(wf, ((0, b_pad - B), (0, c_pad - C)))
    labels_p = labels.astype(jnp.int32)
    if b_pad != B:
        labels_p = jnp.pad(labels_p, (0, b_pad - B))
    labels2d = labels_p.reshape(b_pad, 1)

    kernel = functools.partial(
        _angular_penalty_kernel,
        loss_type=loss_type, s=float(s), m=float(m), eps=float(eps),
        num_classes=C, tile_c=tile_c, has_col_pad=has_col_pad)

    out = pl.pallas_call(
        kernel,
        out_shape=jax.ShapeDtypeStruct((1, b_pad), jnp.float32),
        grid=(nb, nc),
        in_specs=[
            pl.BlockSpec((tile_b, tile_c), lambda b, c: (b, c)),   # wf tiles
            pl.BlockSpec((tile_b, 1), lambda b, c: (b, 0)),        # labels, resident over c
        ],
        out_specs=pl.BlockSpec((1, tile_b), lambda b, c: (0, b)),  # lane-dense losses
        scratch_shapes=[pltpu.VMEM((tile_b, 1), jnp.float32)] * 3,  # target, max, sum
        compiler_params=pltpu.CompilerParams(
            dimension_semantics=("parallel", "arbitrary"),
            vmem_limit_bytes=32 * 1024 * 1024),
    )(wf_p, labels2d)

    per_row = out[0, :B]              # == -loss per example
    if reduction:
        return jnp.mean(per_row)      # == -mean(loss)
    return per_row


def _reference(wf, labels, *, loss_type, s, m, eps, reduction=True):
    """Numerically-stable pure-JAX reference (same math as the PyTorch forward)."""
    C = wf.shape[1]
    target = jnp.take_along_axis(wf, labels[:, None], axis=1)          # (B, 1)
    if loss_type == 'cosface':
        numerator = s * (target - m)
    elif loss_type == 'arcface':
        numerator = s * jnp.cos(jnp.arccos(jnp.clip(target, -1.0 + eps, 1.0 - eps)) + m)
    else:  # sphereface
        numerator = s * jnp.cos(m * jnp.arccos(jnp.clip(target, -1.0 + eps, 1.0 - eps)))
    onehot = labels[:, None] == jnp.arange(C)[None, :]
    z_nontarget = jnp.where(onehot, -jnp.inf, s * wf)
    log_den = jax.nn.logsumexp(jnp.concatenate([numerator, z_nontarget], axis=1),
                               axis=1, keepdims=True)
    loss = numerator - log_den
    return -jnp.mean(loss) if reduction else -loss[:, 0]


if __name__ == "__main__":
    key = jax.random.PRNGKey(0)

    # --- Check 1: arcface, reduced scalar, single-tile path (B=8, C=128). -----------
    B, C = 8, 128
    k1, k2, k3, k4 = jax.random.split(key, 4)
    wf = jnp.tanh(jax.random.normal(k1, (B, C), dtype=jnp.float32))   # cosine-like values
    labels = jax.random.randint(k2, (B,), 0, C, dtype=jnp.int32)

    out = angular_penalty_sm_loss(wf, labels, loss_type='arcface')
    out = jax.block_until_ready(out)
    ref = _reference(wf, labels, loss_type='arcface', s=64.0, m=0.5, eps=1e-7)
    assert jnp.allclose(out, ref, rtol=1e-3, atol=1e-3), (out, ref)

    # --- Check 2: cosface, per-row losses, multi C-tile + padded B and C path. -------
    B2, C2 = 13, 5120   # -> b_pad=16, tile_c=4096, c_pad=8192, grid=(1, 2)
    wf2 = jnp.tanh(jax.random.normal(k3, (B2, C2), dtype=jnp.float32))
    labels2 = jax.random.randint(k4, (B2,), 0, C2, dtype=jnp.int32)

    out2 = angular_penalty_sm_loss(wf2, labels2, loss_type='cosface', reduction=False)
    out2 = jax.block_until_ready(out2)
    ref2 = _reference(wf2, labels2, loss_type='cosface', s=30.0, m=0.4, eps=1e-7,
                      reduction=False)
    assert jnp.allclose(out2, ref2, rtol=1e-3, atol=1e-3), (out2, ref2)

    # --- Check 3: sphereface, exercises the arccos/cos finalize path. ----------------
    out3 = angular_penalty_sm_loss(wf, labels, loss_type='sphereface', reduction=False)
    out3 = jax.block_until_ready(out3)
    ref3 = _reference(wf, labels, loss_type='sphereface', s=64.0, m=1.35, eps=1e-7,
                      reduction=False)
    assert jnp.allclose(out3, ref3, rtol=1e-3, atol=1e-3), (out3, ref3)

    print("KERNEL_OK")
</pallas_src>

<mosaic_0001>
module attributes {stable_mosaic.version = 11 : i64} {
  func.func @_angular_penalty_kernel(%arg0: i32, %arg1: i32, %arg2: memref<8x128xf32, #tpu.memory_space<vmem>>, %arg3: memref<8x1xi32, #tpu.memory_space<vmem>>, %arg4: memref<1x8xf32, #tpu.memory_space<vmem>>, %arg5: memref<8x1xf32, #tpu.memory_space<vmem>>, %arg6: memref<8x1xf32, #tpu.memory_space<vmem>>, %arg7: memref<8x1xf32, #tpu.memory_space<vmem>>) attributes {dimension_semantics = [#tpu.dimension_semantics<parallel>, #tpu.dimension_semantics<arbitrary>], iteration_bounds = array<i64: 1, 1>, scalar_prefetch = 0 : i64, scratch_operands = 3 : i64, tpu.core_type = #tpu.core_type<tc>, window_params = [{transform_indices = @transform_0, window_bounds = array<i64: 8, 128>}, {transform_indices = @transform_1, window_bounds = array<i64: 8, 1>}, {transform_indices = @transform_2, window_bounds = array<i64: 1, 8>}]} {
    %c0_i32 = arith.constant 0 : i32
    %0 = arith.cmpi eq, %arg1, %c0_i32 : i32
    %1 = arith.extui %0 : i1 to i32
    %c0_i32_0 = arith.constant 0 : i32
    %2 = arith.cmpi ne, %1, %c0_i32_0 : i32
    scf.if %2 {
      %cst_27 = arith.constant 0.000000e+00 : f32
      %45 = vector.broadcast %cst_27 : f32 to vector<8x1xf32>
      %c0_28 = arith.constant 0 : index
      %c0_29 = arith.constant 0 : index
      %46 = vector.load %arg5[%c0_28, %c0_29] : memref<8x1xf32, #tpu.memory_space<vmem>>, vector<8x1xf32>
      tpu.vector_store %arg5[%c0_28, %c0_29], %45 {strides = array<i32>} : memref<8x1xf32, #tpu.memory_space<vmem>>, vector<8x1xf32>,
      %cst_30 = arith.constant -1.000000e+30 : f32
      %47 = vector.broadcast %cst_30 : f32 to vector<8x1xf32>
      %c0_31 = arith.constant 0 : index
      %c0_32 = arith.constant 0 : index
      %48 = vector.load %arg6[%c0_31, %c0_32] : memref<8x1xf32, #tpu.memory_space<vmem>>, vector<8x1xf32>
      tpu.vector_store %arg6[%c0_31, %c0_32], %47 {strides = array<i32>} : memref<8x1xf32, #tpu.memory_space<vmem>>, vector<8x1xf32>,
      %cst_33 = arith.constant 0.000000e+00 : f32
      %49 = vector.broadcast %cst_33 : f32 to vector<8x1xf32>
      %c0_34 = arith.constant 0 : index
      %c0_35 = arith.constant 0 : index
      %50 = vector.load %arg7[%c0_34, %c0_35] : memref<8x1xf32, #tpu.memory_space<vmem>>, vector<8x1xf32>
      tpu.vector_store %arg7[%c0_34, %c0_35], %49 {strides = array<i32>} : memref<8x1xf32, #tpu.memory_space<vmem>>, vector<8x1xf32>,
    } else {
    }
    %c0 = arith.constant 0 : index
    %c0_1 = arith.constant 0 : index
    %3 = vector.load %arg2[%c0, %c0_1] : memref<8x128xf32, #tpu.memory_space<vmem>>, vector<8x128xf32>
    %c0_2 = arith.constant 0 : index
    %c0_3 = arith.constant 0 : index
    %4 = vector.load %arg3[%c0_2, %c0_3] : memref<8x1xi32, #tpu.memory_space<vmem>>, vector<8x1xi32>
    %5 = tpu.iota {dimensions = array<i32: 1>} : vector<8x128xi32>
    %c128_i32 = arith.constant 128 : i32
    %6 = arith.muli %arg1, %c128_i32 : i32
    %7 = vector.broadcast %6 : i32 to vector<8x128xi32>
    %8 = arith.addi %5, %7 : vector<8x128xi32>
    %9 = vector.broadcast %4 : vector<8x1xi32> to vector<8x128xi32>
    %10 = arith.cmpi eq, %8, %9 : vector<8x128xi32>
    %cst = arith.constant dense<true> : vector<8x128xi1>
    %11 = arith.xori %10, %cst : vector<8x128xi1>
    %c0_4 = arith.constant 0 : index
    %c0_5 = arith.constant 0 : index
    %12 = vector.load %arg5[%c0_4, %c0_5] : memref<8x1xf32, #tpu.memory_space<vmem>>, vector<8x1xf32>
    %cst_6 = arith.constant 0.000000e+00 : f32
    %13 = vector.broadcast %cst_6 : f32 to vector<8x128xf32>
    %14 = arith.select %10, %3, %13 : vector<8x128xi1>, vector<8x128xf32>
    %cst_7 = arith.constant dense<0.000000e+00> : vector<8xf32>
    %15 = vector.multi_reduction <add>, %14, %cst_7 [1] : vector<8x128xf32> to vector<8xf32>
    %16 = vector.shape_cast %15 : vector<8xf32> to vector<8x1xf32>
    %17 = arith.addf %12, %16 : vector<8x1xf32>
    %c0_8 = arith.constant 0 : index
    %c0_9 = arith.constant 0 : index
    %18 = vector.load %arg5[%c0_8, %c0_9] : memref<8x1xf32, #tpu.memory_space<vmem>>, vector<8x1xf32>
    tpu.vector_store %arg5[%c0_8, %c0_9], %17 {strides = array<i32>} : memref<8x1xf32, #tpu.memory_space<vmem>>, vector<8x1xf32>,
    %cst_10 = arith.constant 6.400000e+01 : f32
    %19 = vector.broadcast %cst_10 : f32 to vector<8x128xf32>
    %20 = arith.mulf %19, %3 : vector<8x128xf32>
    %cst_11 = arith.constant -1.000000e+30 : f32
    %21 = vector.broadcast %cst_11 : f32 to vector<8x128xf32>
    %22 = arith.select %11, %20, %21 : vector<8x128xi1>, vector<8x128xf32>
    %c0_12 = arith.constant 0 : index
    %c0_13 = arith.constant 0 : index
    %23 = vector.load %arg6[%c0_12, %c0_13] : memref<8x1xf32, #tpu.memory_space<vmem>>, vector<8x1xf32>
    %cst_14 = arith.constant dense<0xFF800000> : vector<8xf32>
    %24 = vector.multi_reduction <maximumf>, %22, %cst_14 [1] : vector<8x128xf32> to vector<8xf32>
    %25 = vector.shape_cast %24 : vector<8xf32> to vector<8x1xf32>
    %26 = arith.maximumf %23, %25 : vector<8x1xf32>
    %27 = vector.broadcast %26 : vector<8x1xf32> to vector<8x128xf32>
    %28 = arith.subf %20, %27 : vector<8x128xf32>
    %29 = math.exp %28 : vector<8x128xf32>
    %cst_15 = arith.constant 0.000000e+00 : f32
    %30 = vector.broadcast %cst_15 : f32 to vector<8x128xf32>
    %31 = arith.select %11, %29, %30 : vector<8x128xi1>, vector<8x128xf32>
    %c0_16 = arith.constant 0 : index
    %c0_17 = arith.constant 0 : index
    %32 = vector.load %arg6[%c0_16, %c0_17] : memref<8x1xf32, #tpu.memory_space<vmem>>, vector<8x1xf32>
    %33 = arith.subf %32, %26 : vector<8x1xf32>
    %34 = math.exp %33 : vector<8x1xf32>
    %c0_18 = arith.constant 0 : index
    %c0_19 = arith.constant 0 : index
    %35 = vector.load %arg7[%c0_18, %c0_19] : memref<8x1xf32, #tpu.memory_space<vmem>>, vector<8x1xf32>
    %36 = arith.mulf %34, %35 : vector<8x1xf32>
    %cst_20 = arith.constant dense<0.000000e+00> : vector<8xf32>
    %37 = vector.multi_reduction <add>, %31, %cst_20 [1] : vector<8x128xf32> to vector<8xf32>
    %38 = vector.shape_cast %37 : vector<8xf32> to vector<8x1xf32>
    %39 = arith.addf %36, %38 : vector<8x1xf32>
    %c0_21 = arith.constant 0 : index
    %c0_22 = arith.constant 0 : index
    %40 = vector.load %arg7[%c0_21, %c0_22] : memref<8x1xf32, #tpu.memory_space<vmem>>, vector<8x1xf32>
    tpu.vector_store %arg7[%c0_21, %c0_22], %39 {strides = array<i32>} : memref<8x1xf32, #tpu.memory_space<vmem>>, vector<8x1xf32>,
    %c0_23 = arith.constant 0 : index
    %c0_24 = arith.constant 0 : index
    %41 = vector.load %arg6[%c0_23, %c0_24] : memref<8x1xf32, #tpu.memory_space<vmem>>, vector<8x1xf32>
    tpu.vector_store %arg6[%c0_23, %c0_24], %26 {strides = array<i32>} : memref<8x1xf32, #tpu.memory_space<vmem>>, vector<8x1xf32>,
    %c0_i32_25 = arith.constant 0 : i32
    %42 = arith.cmpi eq, %arg1, %c0_i32_25 : i32
    %43 = arith.extui %42 : i1 to i32
    %c0_i32_26 = arith.constant 0 : i32
    %44 = arith.cmpi ne, %43, %c0_i32_26 : i32
    scf.if %44 {
      %c0_27 = arith.constant 0 : index
      %c0_28 = arith.constant 0 : index
      %45 = vector.load %arg5[%c0_27, %c0_28] : memref<8x1xf32, #tpu.memory_space<vmem>>, vector<8x1xf32>
      %cst_29 = arith.constant -0.99999988 : f32
      %cst_30 = arith.constant 0.99999988 : f32
      %46 = vector.broadcast %cst_29 : f32 to vector<8x1xf32>
      %47 = arith.maximumf %46, %45 : vector<8x1xf32>
      %48 = vector.broadcast %cst_30 : f32 to vector<8x1xf32>
      %49 = arith.minimumf %48, %47 : vector<8x1xf32>
      %cst_31 = arith.constant 0.87758255 : f32
      %50 = vector.broadcast %cst_31 : f32 to vector<8x1xf32>
      %51 = arith.mulf %49, %50 : vector<8x1xf32>
      %52 = arith.mulf %49, %49 : vector<8x1xf32>
      %cst_32 = arith.constant 1.000000e+00 : f32
      %53 = vector.broadcast %cst_32 : f32 to vector<8x1xf32>
      %54 = arith.subf %53, %52 : vector<8x1xf32>
      %55 = math.sqrt %54 : vector<8x1xf32>
      %cst_33 = arith.constant 0.47942555 : f32
      %56 = vector.broadcast %cst_33 : f32 to vector<8x1xf32>
      %57 = arith.mulf %55, %56 : vector<8x1xf32>
      %58 = arith.subf %51, %57 : vector<8x1xf32>
      %cst_34 = arith.constant 6.400000e+01 : f32
      %59 = vector.broadcast %cst_34 : f32 to vector<8x1xf32>
      %60 = arith.mulf %59, %58 : vector<8x1xf32>
      %c0_35 = arith.constant 0 : index
      %c0_36 = arith.constant 0 : index
      %61 = vector.load %arg6[%c0_35, %c0_36] : memref<8x1xf32, #tpu.memory_space<vmem>>, vector<8x1xf32>
      %62 = arith.maximumf %60, %61 : vector<8x1xf32>
      %63 = arith.subf %60, %62 : vector<8x1xf32>
      %64 = math.exp %63 : vector<8x1xf32>
      %c0_37 = arith.constant 0 : index
      %c0_38 = arith.constant 0 : index
      %65 = vector.load %arg7[%c0_37, %c0_38] : memref<8x1xf32, #tpu.memory_space<vmem>>, vector<8x1xf32>
      %c0_39 = arith.constant 0 : index
      %c0_40 = arith.constant 0 : index
      %66 = vector.load %arg6[%c0_39, %c0_40] : memref<8x1xf32, #tpu.memory_space<vmem>>, vector<8x1xf32>
      %67 = arith.subf %66, %62 : vector<8x1xf32>
      %68 = math.exp %67 : vector<8x1xf32>
      %69 = arith.mulf %65, %68 : vector<8x1xf32>
      %70 = arith.addf %64, %69 : vector<8x1xf32>
      %71 = math.log %70 : vector<8x1xf32>
      %72 = arith.addf %62, %71 : vector<8x1xf32>
      %73 = arith.subf %72, %60 : vector<8x1xf32>
      %74 = tpu.iota {dimensions = array<i32: 0>} : vector<8x8xi32>
      %75 = tpu.iota {dimensions = array<i32: 1>} : vector<8x8xi32>
      %76 = arith.cmpi eq, %74, %75 : vector<8x8xi32>
      %cst_41 = arith.constant 0.000000e+00 : f32
      %77 = vector.shape_cast %73 : vector<8x1xf32> to vector<8x1xf32>
      %78 = vector.broadcast %77 : vector<8x1xf32> to vector<8x8xf32>
      %79 = vector.broadcast %cst_41 : f32 to vector<8x8xf32>
      %80 = arith.select %76, %78, %79 : vector<8x8xi1>, vector<8x8xf32>
      %cst_42 = arith.constant dense<0.000000e+00> : vector<8xf32>
      %81 = vector.multi_reduction <add>, %80, %cst_42 [0] : vector<8x8xf32> to vector<8xf32>
      %82 = vector.shape_cast %81 : vector<8xf32> to vector<1x8xf32>
      %c0_43 = arith.constant 0 : index
      %c0_44 = arith.constant 0 : index
      %83 = vector.load %arg4[%c0_43, %c0_44] : memref<1x8xf32, #tpu.memory_space<vmem>>, vector<1x8xf32>
      tpu.vector_store %arg4[%c0_43, %c0_44], %82 {strides = array<i32>} : memref<1x8xf32, #tpu.memory_space<vmem>>, vector<1x8xf32>,
    } else {
    }
    return
  }
  func.func @transform_0(%arg0: i32, %arg1: i32) -> (i32, i32) {
    %c0_i32 = arith.constant 0 : i32
    return %arg0, %arg1 : i32, i32
  }
  func.func @transform_1(%arg0: i32, %arg1: i32) -> (i32, i32) {
    %c0_i32 = arith.constant 0 : i32
    %c0_i32_0 = arith.constant 0 : i32
    return %arg0, %c0_i32 : i32, i32
  }
  func.func @transform_2(%arg0: i32, %arg1: i32) -> (i32, i32) {
    %c0_i32 = arith.constant 0 : i32
    %c0_i32_0 = arith.constant 0 : i32
    return %c0_i32, %arg0 : i32, i32
  }
}

</mosaic_0001>

<llo_original>
// kernel: tpu_custom_call.1
$region0: #{tpu_custom_call.1}
  #allocation0 [shape = 'u32[]', space=smem, size = 0x4, offset = 0x4, fixed_abs, tag = 'smem constant byte address 0x4 - core index']
  #allocation1 [shape = 'u32[144,128]{1,0:T(1,128)}', space=vmem, size = 0x12000, scoped, tag = 'internal scratch']
  #allocation2 [shape = 'f32[8,1]{1,0:T(8,128)}', space=vmem, size = 0x1000, scoped, tag = 'scratch operand']
  #allocation3 [shape = 'f32[8,1]{1,0:T(8,128)}', space=vmem, size = 0x1000, scoped, tag = 'scratch operand']
  #allocation4 [shape = 'f32[8,1]{1,0:T(8,128)}', space=vmem, size = 0x1000, scoped, tag = 'scratch operand']
  %s0 = inlined_call_operand.vmem [shape: f32[8,128], index: 0, kind: input, shape index: {}]
  %s1 = inlined_call_operand.vmem [shape: s32[8,1], index: 1, kind: input, shape index: {}]
  %s2 = inlined_call_operand.hbm [shape: f32[1,8], index: 2, kind: output, shape index: {}]
  %s3 = sld [smem:[#allocation0]]
  $region26: #{tpu_custom_call.1} parent=0
    _
  %s5 = ssub.s32 1, %s3
  %s6 = scalar_select 0, %s5, %s3
  $region1: #{tpu_custom_call.1} parent=0
    #allocation5 [shape = 'u8[512]{0}', space=vmem, size = 0x400, scoped, tag = 'output window, operand 0, single buffered']
    #allocation6 [shape = 's32[1]{0}', space=sflag, size = 0x4, scoped, tag = 'scoped memory for tpu_custom_call.1']
    %7 = vsyncpa [#allocation6], 0
    // Predicated region
    $region2: #{tpu_custom_call.1} parent=1 // pred_check
      _
    $region3: #{tpu_custom_call.1} parent=1 // pred_check_branch
      %9 = sbr.rel (0) target = $region5
    $region4: #{tpu_custom_call.1} parent=1 // pred_region
      _
    $region5: #{tpu_custom_call.1} parent=1 // pred_fallthru
      _
    // Predicated region
    $region6: #{tpu_custom_call.1} parent=1 // pred_check
      _
    $region7: #{tpu_custom_call.1} parent=1 // pred_check_branch
      %11 = sbr.rel (0) target = $region9
    $region8: #{tpu_custom_call.1} parent=1 // pred_region
      _
    $region9: #{tpu_custom_call.1} parent=1 // pred_fallthru
      _
    %p12 = scmp.eq.s32.totalorder 0, 0
    // Predicated region
    $region10: #{tpu_custom_call.1} parent=1 // pred_check
      %p13 = pneg %p12
    $region11: #{tpu_custom_call.1} parent=1 // pred_check_branch
      %15 = sbr.rel (%p13) target = $region13
    $region12: #{tpu_custom_call.1} parent=1 // pred_region
      %vm16 = vcmask 7168
      %17 = vst.msk [vmem:[#allocation2] sm:$0xff] %vm16, 0.0
      %18 = vst.msk [vmem:[#allocation3] sm:$0xff] %vm16, -1e+30
      %19 = vst.msk [vmem:[#allocation4] sm:$0xff] %vm16, 0.0
    $region13: #{tpu_custom_call.1} parent=1 // pred_fallthru
      _
    %v20 = vld [vmem:[%s0] sm:$0xff]
    %v21 = vld [vmem:[%s1] sm:$0xff]
    %v22 = vlaneseq
    %v23 = vand.u32 %v22, 127
    %s24 = smul.u32 0, 128
    %v25 = vstv %s24
    %v26 = vadd.s32 %v23, %v25
    %27 = vset.pattern.permute.xlu0 0
    %28 = vperm.xlu0 %27, %v21
    %v29 = vpop.permute.xlu0 %28
    %vm30 = vcmp.eq.s32.totalorder %v26, %v29
    %vm31 = vmxor %vm30, 1
    %v32 = vld [vmem:[#allocation2] sm:$0xff]
    %v33 = vsel %vm30, %v20, 0.0
    %34 = vadd.xlane.f32.xlu0 %v33
    %v35 = vpop.xlane.xlu0 %34
    %v36 = vadd.f32 %v32, %v35
    %vm37 = vcmask 7168
    %38 = vst.msk [vmem:[#allocation2] sm:$0xff] %vm37, %v36
    %v39 = vmul.f32 %v20, 64.0
    %v40 = vsel %vm31, %v39, -1e+30
    %v41 = vld [vmem:[#allocation3] sm:$0xff]
    %42 = vmax.xlane.f32.xlu0 %v40
    %v43 = vpop.xlane.xlu0 %42
    %v44 = vmax.f32 %v41, %v43
    %46 = vset.pattern.permute.xlu0 0
    %47 = vperm.xlu0 %46, %v44
    %v48 = vpop.permute.xlu0 %47
    %v50 = vsub.f32 %v39, %v48
    %v51 = vmul.f32 %v50, 1.442695
    %v52 = vpow.pop %v51
    %v53 = vsel %vm31, %v52, 0.0
    %v54 = vsub.f32 %v41, %v44
    %v55 = vmul.f32 %v54, 1.442695
    %v56 = vpow.pop %v55
    %v57 = vld [vmem:[#allocation4] sm:$0xff]
    %v58 = vmul.f32 %v56, %v57
    %59 = vadd.xlane.f32.xlu0 %v53
    %v60 = vpop.xlane.xlu0 %59
    %v61 = vadd.f32 %v58, %v60
    %62 = vst.msk [vmem:[#allocation4] sm:$0xff] %vm37, %v61
    %63 = vst.msk [vmem:[#allocation3] sm:$0xff] %vm37, %v44
    // Predicated region
    $region14: #{tpu_custom_call.1} parent=1 // pred_check
      %p64 = pneg %p12
    $region15: #{tpu_custom_call.1} parent=1 // pred_check_branch
      %66 = sbr.rel (%p64) target = $region17
    $region16: #{tpu_custom_call.1} parent=1 // pred_region
      %v67 = vld [vmem:[#allocation2] sm:$0xff]
      %v68 = vmax.f32 %v67, -0.9999999
      %v69 = vmin.f32 %v68, 0.9999999
      %v70 = vmul.f32 %v69, 0.87758255
      %v71 = vmul.f32 %v69, %v69
      %v72 = vsub.f32 1.0, %v71
      %v73 = vrsqrt.pop %v72
      %v74 = vmul.f32 %v72, %v73
      %vm75 = vcmp.eq.f32.partialorder %v72, inf
      %v76 = vsel %vm75, %v72, %v74
      %vm77 = vcmp.eq.f32.partialorder %v72, 0.0
      %v78 = vand.u32 %v72, 2147483648
      %v79 = vsel %vm77, %v78, %v76
      %v80 = vmul.f32 %v79, 0.47942555
      %v81 = vsub.f32 %v70, %v80
      %v82 = vmul.f32 %v81, 64.0
      %v83 = vld [vmem:[#allocation3] sm:$0xff]
      %v84 = vmax.f32 %v82, %v83
      %v85 = vsub.f32 %v82, %v84
      %v86 = vmul.f32 %v85, 1.442695
      %v87 = vpow.pop %v86
      %v88 = vld [vmem:[#allocation4] sm:$0xff]
      %v89 = vsub.f32 %v83, %v84
      %v90 = vmul.f32 %v89, 1.442695
      %v91 = vpow.pop %v90
      %v92 = vmul.f32 %v88, %v91
      %v93 = vadd.f32 %v87, %v92
      %v94 = vlog2.pop %v93
      %v95 = vmul.f32 %v94, 0.6931472
      %v96 = vadd.f32 %v84, %v95
      %v97 = vsub.f32 %v96, %v82
      %v98 = vlaneseq
      %v99 = vshrl.u32 %v98, 7
      %vm100 = vcmp.eq.s32.totalorder %v99, %v23
      %102 = vset.pattern.permute.xlu0 0
      %103 = vperm.xlu0 %102, %v97
      %v104 = vpop.permute.xlu0 %103
      %v106 = vsel %vm100, %v104, 0.0
      %vm107 = vcmask 64512
      %v108 = vsel %vm107, %v106, 0.0
      %v109 = vrot.slane %v108, 4
      %v110 = vadd.f32 %v108, %v109
      %v111 = vrot.slane %v110, 2
      %v112 = vadd.f32 %v110, %v111
      %v113 = vrot.slane %v112, 1
      %v114 = vadd.f32 %v112, %v113
      %vm115 = vcmask 57344
      %116 = vst.msk [vmem:[#allocation5] sm:$0x1] %vm115, %v114
    $region17: #{tpu_custom_call.1} parent=1 // pred_fallthru
      _
    // Predicated region
    $region18: #{tpu_custom_call.1} parent=1 // pred_check
      _
    $region19: #{tpu_custom_call.1} parent=1 // pred_check_branch
      %118 = sbr.rel (0) target = $region21
    $region20: #{tpu_custom_call.1} parent=1 // pred_region
      %s120 = ssub.s32 16, 16
      %121 = vsyncadd [#allocation6], %s120
      %s123 = sshll.u32 [#allocation5], 4
      %s124 = int_to_ptr.vmem [resolvable:$true] %s123
      %126 = dma.vmem_to_hbm [thread:$0]  %s124, 16, %s2, [#allocation6]
    $region21: #{tpu_custom_call.1} parent=1 // pred_fallthru
      _
    // Predicated region
    $region22: #{tpu_custom_call.1} parent=1 // pred_check
      _
    $region23: #{tpu_custom_call.1} parent=1 // pred_check_branch
      %128 = sbr.rel (0) target = $region25
    $region24: #{tpu_custom_call.1} parent=1 // pred_region
      %129 = dma.done [#allocation6], 16
    $region25: #{tpu_custom_call.1} parent=1 // pred_fallthru
      _
    %130 = vsyncpa [#allocation6], 1

</llo_original>
